<compile_context>
chip_gen: v7x
topology: tpu7x:2x2x1
jax: 0.10.0
libtpu: 0.0.40
codegen_flags: <defaults>
</compile_context>

<pallas_src>
import math

import jax
import jax.numpy as jnp
from jax.experimental import pallas as pl
from jax.experimental.pallas import tpu as pltpu


def _sinusoidal_pos_emb_kernel(x_ref, freqs_ref, mask_ref, out_ref):
    # x_ref:     (tb, 1)    f32  timesteps for this batch tile
    # freqs_ref: (1, dim)   f32  frequency table tiled twice: [f | f]
    # mask_ref:  (1, dim)   f32  1.0 in first half (sin), 0.0 in second (cos)
    # out_ref:   (tb, dim)
    args = x_ref[...] * freqs_ref[...]                 # (tb, dim) broadcast outer product (VPU)
    use_sin = mask_ref[...] != 0.0                     # (1, dim) bool, broadcast in select
    emb = jnp.where(use_sin, jnp.sin(args), jnp.cos(args))   # EUP + vselect
    out_ref[...] = emb.astype(out_ref.dtype)           # one full-width lane-dense store


def _round_up(n: int, m: int) -> int:
    return ((n + m - 1) // m) * m


def sinusoidal_pos_emb(
    x: jax.Array,
    dim: int,
    *,
    block_b: int = 1024,
    out_dtype=jnp.float32,
) -> jax.Array:
    """Pallas TPU implementation of SinusoidalPosEmb(dim)(x).

    Args:
      x:         (B,) array of timesteps.
      dim:       embedding dimension (even, > 2).
      block_b:   max rows per grid step (multiple of 8).
      out_dtype: output dtype (f32 by default; bf16 halves store bytes if the
                 downstream consumer accepts it).
    Returns:
      (B, dim) embeddings: [sin | cos].
    """
    assert dim % 2 == 0 and dim > 2, "dim must be even and > 2"
    half_dim = dim // 2
    b = x.shape[0]

    # Frequency table computed once at trace time (hoisted out of the kernel),
    # tiled twice along lanes so the kernel writes a single contiguous row.
    scale = math.log(10000.0) / (half_dim - 1)
    freqs = jnp.exp(jnp.arange(half_dim, dtype=jnp.float32) * (-scale))
    freqs_full = jnp.concatenate([freqs, freqs]).reshape(1, dim)
    sin_mask = jnp.concatenate(
        [jnp.ones((half_dim,), jnp.float32), jnp.zeros((half_dim,), jnp.float32)]
    ).reshape(1, dim)

    x2d = x.astype(jnp.float32).reshape(b, 1)

    # Batch tile: multiple of 8 sublanes, large enough to amortize the ~0.35us
    # per-grid-step overhead, small enough that the double-buffered output tile
    # (tb*dim*4*2 bytes) stays under ~8 MiB (safe on v5e's 16 MiB scoped-VMEM
    # default; well under v6e/v7x 32 MiB). The 1024 cap also guarantees >= 2
    # parallel grid steps (both v7x TensorCores busy) once b > 1024.
    tb_cap_vmem = max(8, ((8 * 1024 * 1024) // (dim * 4 * 2)) // 8 * 8)
    if b >= 8:
        tb = min(max(8, block_b // 8 * 8), tb_cap_vmem, (b // 8) * 8)
    else:
        tb = 8  # single partial block; writes are clipped to b rows
    n_tiles = pl.cdiv(b, tb)  # partial last block: reads padded, writes clipped

    cost = pl.CostEstimate(
        flops=2 * b * dim,                      # outer-product mul + select
        transcendentals=2 * b * dim,            # sin + cos over full width
        bytes_accessed=b * dim * jnp.dtype(out_dtype).itemsize + b * 4 + 2 * dim * 4,
    )

    return pl.pallas_call(
        _sinusoidal_pos_emb_kernel,
        out_shape=jax.ShapeDtypeStruct((b, dim), out_dtype),
        grid=(n_tiles,),
        in_specs=[
            pl.BlockSpec((tb, 1), lambda i: (i, 0)),        # x tile
            pl.BlockSpec((1, dim), lambda i: (0, 0)),       # shared freq table (re-DMA elided)
            pl.BlockSpec((1, dim), lambda i: (0, 0)),       # shared sin/cos mask
        ],
        out_specs=pl.BlockSpec((tb, dim), lambda i: (i, 0)),
        compiler_params=pltpu.CompilerParams(
            dimension_semantics=("parallel",),
        ),
        cost_estimate=cost,
    )(x2d, freqs_full, sin_mask)


def _reference(x, dim):
    half_dim = dim // 2
    emb = math.log(10000.0) / (half_dim - 1)
    emb = jnp.exp(jnp.arange(half_dim, dtype=jnp.float32) * -emb)
    emb = x.astype(jnp.float32)[:, None] * emb[None, :]
    return jnp.concatenate([jnp.sin(emb), jnp.cos(emb)], axis=-1)


if __name__ == "__main__":
    # Deterministic, diffusion-timestep-like values.
    B, DIM = 8, 128
    x = jax.random.uniform(
        jax.random.PRNGKey(0), (B,), dtype=jnp.float32, minval=0.0, maxval=1000.0
    )
    out = jax.block_until_ready(sinusoidal_pos_emb(x, DIM))
    ref = _reference(x, DIM)
    assert out.shape == (B, DIM), out.shape
    assert jnp.allclose(out, ref, atol=1e-5, rtol=1e-5), "mismatch vs reference"

    # Non-multiple-of-8 batch -> partial last block (clipped write), larger dim.
    B2, DIM2 = 37, 256
    x2 = jax.random.uniform(
        jax.random.PRNGKey(1), (B2,), dtype=jnp.float32, minval=0.0, maxval=1000.0
    )
    out2 = jax.block_until_ready(sinusoidal_pos_emb(x2, DIM2))
    ref2 = _reference(x2, DIM2)
    assert out2.shape == (B2, DIM2), out2.shape
    assert jnp.allclose(out2, ref2, atol=1e-5, rtol=1e-5), "mismatch vs reference (partial block)"

    # Tiny dim (< 128 lanes) plus a forced multi-tile grid.
    B3, DIM3 = 40, 32
    x3 = jax.random.uniform(
        jax.random.PRNGKey(2), (B3,), dtype=jnp.float32, minval=0.0, maxval=1000.0
    )
    out3 = jax.block_until_ready(sinusoidal_pos_emb(x3, DIM3, block_b=16))
    ref3 = _reference(x3, DIM3)
    assert out3.shape == (B3, DIM3), out3.shape
    assert jnp.allclose(out3, ref3, atol=1e-5, rtol=1e-5), "mismatch vs reference (multi-tile)"

    print("KERNEL_OK")
</pallas_src>

<mosaic_0001>
module attributes {stable_mosaic.version = 11 : i64} {
  func.func @_sinusoidal_pos_emb_kernel(%arg0: i32, %arg1: memref<8x1xf32, #tpu.memory_space<vmem>>, %arg2: memref<1x128xf32, #tpu.memory_space<vmem>>, %arg3: memref<1x128xf32, #tpu.memory_space<vmem>>, %arg4: memref<8x128xf32, #tpu.memory_space<vmem>>) attributes {dimension_semantics = [#tpu.dimension_semantics<parallel>], iteration_bounds = array<i64: 1>, scalar_prefetch = 0 : i64, scratch_operands = 0 : i64, tpu.core_type = #tpu.core_type<tc>, window_params = [{transform_indices = @transform_0, window_bounds = array<i64: 8, 1>}, {pipeline_mode = #tpu.pipeline_mode<synchronous>, transform_indices = @transform_1, window_bounds = array<i64: 1, 128>}, {pipeline_mode = #tpu.pipeline_mode<synchronous>, transform_indices = @transform_2, window_bounds = array<i64: 1, 128>}, {transform_indices = @transform_3, window_bounds = array<i64: 8, 128>}]} {
    %c0 = arith.constant 0 : index
    %c0_0 = arith.constant 0 : index
    %0 = vector.load %arg1[%c0, %c0_0] : memref<8x1xf32, #tpu.memory_space<vmem>>, vector<8x1xf32>
    %c0_1 = arith.constant 0 : index
    %c0_2 = arith.constant 0 : index
    %1 = vector.load %arg2[%c0_1, %c0_2] : memref<1x128xf32, #tpu.memory_space<vmem>>, vector<1x128xf32>
    %2 = vector.broadcast %0 : vector<8x1xf32> to vector<8x128xf32>
    %3 = vector.broadcast %1 : vector<1x128xf32> to vector<8x128xf32>
    %4 = arith.mulf %2, %3 : vector<8x128xf32>
    %c0_3 = arith.constant 0 : index
    %c0_4 = arith.constant 0 : index
    %5 = vector.load %arg3[%c0_3, %c0_4] : memref<1x128xf32, #tpu.memory_space<vmem>>, vector<1x128xf32>
    %cst = arith.constant 0.000000e+00 : f32
    %6 = vector.broadcast %cst : f32 to vector<1x128xf32>
    %7 = arith.cmpf one, %5, %6 : vector<1x128xf32>
    %8 = math.sin %4 : vector<8x128xf32>
    %9 = math.cos %4 : vector<8x128xf32>
    %10 = vector.shape_cast %7 : vector<1x128xi1> to vector<1x128xi1>
    %11 = vector.broadcast %10 : vector<1x128xi1> to vector<8x128xi1>
    %12 = arith.select %11, %8, %9 : vector<8x128xi1>, vector<8x128xf32>
    %c0_5 = arith.constant 0 : index
    %c0_6 = arith.constant 0 : index
    %13 = vector.load %arg4[%c0_5, %c0_6] : memref<8x128xf32, #tpu.memory_space<vmem>>, vector<8x128xf32>
    tpu.vector_store %arg4[%c0_5, %c0_6], %12 {strides = array<i32>} : memref<8x128xf32, #tpu.memory_space<vmem>>, vector<8x128xf32>,
    return
  }
  func.func @transform_0(%arg0: i32) -> (i32, i32) {
    %c0_i32 = arith.constant 0 : i32
    %c0_i32_0 = arith.constant 0 : i32
    return %arg0, %c0_i32 : i32, i32
  }
  func.func @transform_1(%arg0: i32) -> (i32, i32) {
    %c0_i32 = arith.constant 0 : i32
    %c0_i32_0 = arith.constant 0 : i32
    %c0_i32_1 = arith.constant 0 : i32
    return %c0_i32, %c0_i32_0 : i32, i32
  }
  func.func @transform_2(%arg0: i32) -> (i32, i32) {
    %c0_i32 = arith.constant 0 : i32
    %c0_i32_0 = arith.constant 0 : i32
    %c0_i32_1 = arith.constant 0 : i32
    return %c0_i32, %c0_i32_0 : i32, i32
  }
  func.func @transform_3(%arg0: i32) -> (i32, i32) {
    %c0_i32 = arith.constant 0 : i32
    %c0_i32_0 = arith.constant 0 : i32
    return %arg0, %c0_i32 : i32, i32
  }
}

</mosaic_0001>

<llo_original>
// kernel: tpu_custom_call.1
$region0: #{tpu_custom_call.1}
  #allocation0 [shape = 'u32[]', space=smem, size = 0x4, offset = 0x4, fixed_abs, tag = 'smem constant byte address 0x4 - core index']
  #allocation1 [shape = 'u32[144,128]{1,0:T(1,128)}', space=vmem, size = 0x12000, scoped, tag = 'internal scratch']
  %s0 = inlined_call_operand.vmem [shape: f32[8,1], index: 0, kind: input, shape index: {}]
  %s1 = inlined_call_operand.vmem [shape: f32[1,128], index: 1, kind: input, shape index: {}]
  %s2 = inlined_call_operand.vmem [shape: f32[1,128], index: 2, kind: input, shape index: {}]
  %s3 = inlined_call_operand.hbm [shape: f32[8,128], index: 3, kind: output, shape index: {}]
  %s4 = sld [smem:[#allocation0]]
  $region22: #{tpu_custom_call.1} parent=0
    _
  %s6 = ssub.s32 1, %s4
  %s7 = scalar_select 0, %s6, %s4
  $region1: #{tpu_custom_call.1} parent=0
    #allocation2 [shape = 'u8[4096]{0}', space=vmem, size = 0x1000, scoped, tag = 'output window, operand 0, single buffered']
    #allocation3 [shape = 's32[1]{0}', space=sflag, size = 0x4, scoped, tag = 'scoped memory for tpu_custom_call.1']
    %8 = vsyncpa [#allocation3], 0
    // Predicated region
    $region2: #{tpu_custom_call.1} parent=1 // pred_check
      _
    $region3: #{tpu_custom_call.1} parent=1 // pred_check_branch
      %10 = sbr.rel (0) target = $region5
    $region4: #{tpu_custom_call.1} parent=1 // pred_region
      _
    $region5: #{tpu_custom_call.1} parent=1 // pred_fallthru
      _
    // Predicated region
    $region6: #{tpu_custom_call.1} parent=1 // pred_check
      _
    $region7: #{tpu_custom_call.1} parent=1 // pred_check_branch
      %12 = sbr.rel (0) target = $region9
    $region8: #{tpu_custom_call.1} parent=1 // pred_region
      _
    $region9: #{tpu_custom_call.1} parent=1 // pred_fallthru
      _
    // Predicated region
    $region10: #{tpu_custom_call.1} parent=1 // pred_check
      _
    $region11: #{tpu_custom_call.1} parent=1 // pred_check_branch
      %14 = sbr.rel (0) target = $region13
    $region12: #{tpu_custom_call.1} parent=1 // pred_region
      _
    $region13: #{tpu_custom_call.1} parent=1 // pred_fallthru
      _
    %v15 = vld [vmem:[%s0] sm:$0xff]
    %v16 = vld [vmem:[%s1] sm:$0x1]
    %18 = vset.pattern.permute.xlu0 0
    %19 = vperm.xlu0 %18, %v15
    %v20 = vpop.permute.xlu0 %19
    %v23 = vlaneseq
    %v24 = vshrl.u32 %v23, 7
    %v25 = vsub.s32 0, %v24
    %v26 = vrot.slane %v16, %v25
    %v28 = vmul.f32 %v20, %v26
    %v29 = vld [vmem:[%s2] sm:$0x1]
    %vm30 = vcmp.ne.f32.partialorder %v29, 0.0
    %v31 = vand.u32 2147483647, %v28
    %vm32 = vcmp.le.f32.partialorder %v31, 0.7853982
    %vm33 = vcmp.lt.s32.totalorder %v28, 0
    %v34 = vand.u32 %v28, 2139095040
    %v35 = vshrl.u32 %v34, 23
    %v36 = vsub.s32 %v35, 127
    %v37 = vand.u32 2147483647, %v28
    %v38 = vand.u32 %v37, 8388607
    %v39 = vor.u32 %v38, 8388608
    %v40 = vsub.s32 0, %v39
    %v41 = vadd.s32 %v36, 1
    %vm42 = vcmp.gt.s32.totalorder %v41, 0
    %v43 = vsel %vm42, %v41, 0
    %v44 = vshrl.u32 %v43, 5
    %v45 = vand.u32 %v43, 31
    %v46 = vsub.s32 32, %v45
    %v47 = vshrl.u32 683565275, %v46
    %v48 = vshll.u32 683565275, %v45
    %v49 = vshrl.u32 2475754826, %v46
    %v50 = vor.u32 %v48, %v49
    %v51 = vshll.u32 2475754826, %v45
    %v52 = vshrl.u32 2131351028, %v46
    %v53 = vor.u32 %v51, %v52
    %v54 = vshll.u32 2131351028, %v45
    %v55 = vshrl.u32 2102212464, %v46
    %v56 = vor.u32 %v54, %v55
    %v57 = vshll.u32 2102212464, %v45
    %v58 = vshrl.u32 920167782, %v46
    %v59 = vor.u32 %v57, %v58
    %v60 = vshll.u32 920167782, %v45
    %v61 = vshrl.u32 1326507024, %v46
    %v62 = vor.u32 %v60, %v61
    %vm63 = vcmp.lt.s32.totalorder %v44, 1
    %vm64 = vcmp.lt.s32.totalorder %v44, 2
    %vm65 = vcmp.lt.s32.totalorder %v44, 3
    %vm66 = vcmp.lt.s32.totalorder %v44, 4
    %v67 = vsel %vm63, %v47, %v50
    %v68 = vsel %vm66, %v56, 2102212464
    %v69 = vsel %vm65, %v53, %v68
    %v70 = vsel %vm64, %v67, %v69
    %v71 = vsel %vm63, %v50, %v53
    %v72 = vsel %vm66, %v59, 920167782
    %v73 = vsel %vm65, %v56, %v72
    %v74 = vsel %vm64, %v71, %v73
    %v75 = vsel %vm63, %v53, %v56
    %v76 = vsel %vm66, %v62, 1326507024
    %v77 = vsel %vm65, %v59, %v76
    %v78 = vsel %vm64, %v75, %v77
    %v79 = vshll.u32 %v39, 8
    %v80 = vmul.u32.u64.compose %v79, %v78
    %v81 = vextract.low.u32 %v80
    %v82 = vextract.high.u32 %v80
    %v83 = vmul.u32.u64.compose %v79, %v74
    %v84 = vextract.low.u32 %v83
    %v85 = vextract.high.u32 %v83
    %v86 = vmul.u32 %v79, %v70
    %v87 = vadd.s32 %v82, %v84
    %vm88 = vc.u32 %v82, %v84
    %v89 = vadd.s32 %v85, 1
    %v90 = vsel %vm88, %v89, %v85
    %v91 = vadd.s32 %v86, %v90
    %v92 = vadd.s32 %v91, 536870912
    %v93 = vshrl.u32 %v92, 30
    %v94 = vshll.u32 %v93, 30
    %v95 = vsub.s32 %v91, %v94
    %vm96 = vcmp.lt.s32.totalorder %v95, 0
    %v97 = vsub.s32 0, %v95
    %v98 = vsel %vm96, %v97, %v95
    %v99 = vclz %v98
    %v100 = vsub.s32 %v99, 2
    %vm101 = vcmp.gt.s32.totalorder 0, %v100
    %v102 = vsel %vm101, 0, %v100
    %v103 = vsub.s32 32, %v102
    %v104 = vshll.u32 %v95, %v102
    %v105 = vshrl.u32 %v87, %v103
    %v106 = vor.u32 %v104, %v105
    %v107 = vsub.s32 4294967266, %v102
    %v108 = vadd.s32 %v107, 127
    %v109 = vshll.u32 %v108, 23
    %v110 = vor.u32 4788187, %v109
    %v111 = vand.u32 2147483647, %v110
    %v113 = vcvt.s32.f32 %v106
    %v114 = vmul.f32 %v113, %v111
    %v115 = vxor.u32 %v114, 2147483648
    %v116 = vsel %vm33, %v115, %v114
    %v117 = vsub.s32 4, %v93
    %v118 = vsel %vm33, %v117, %v93
    %v119 = vsel %vm32, %v28, %v116
    %v120 = vsel %vm32, 0, %v118
    %v121 = vcosq.f32.pop %v119
    %v122 = vsinq.f32.pop %v119
    %vm123 = vweird.f32 %v28
    %v124 = vadd.s32 %v120, 3
    %v125 = vand.u32 %v124, 3
    %vm126 = vcmp.lt.s32.totalorder %v125, 2
    %vm127 = vcmp.eq.s32.totalorder %v125, 0
    %v128 = vxor.u32 %v122, 2147483648
    %v129 = vsel %vm127, %v121, %v128
    %vm130 = vcmp.eq.s32.totalorder %v125, 2
    %v131 = vxor.u32 %v121, 2147483648
    %v132 = vsel %vm130, %v131, %v122
    %v133 = vsel %vm126, %v129, %v132
    %v134 = vsel %vm123, nan, %v133
    %v135 = vand.u32 2147483647, %v28
    %vm136 = vcmp.le.f32.partialorder %v135, 0.7853982
    %vm137 = vcmp.lt.s32.totalorder %v28, 0
    %v138 = vand.u32 %v28, 2139095040
    %v139 = vshrl.u32 %v138, 23
    %v140 = vsub.s32 %v139, 127
    %v141 = vand.u32 2147483647, %v28
    %v142 = vand.u32 %v141, 8388607
    %v143 = vor.u32 %v142, 8388608
    %v144 = vsub.s32 0, %v143
    %v145 = vadd.s32 %v140, 1
    %vm146 = vcmp.gt.s32.totalorder %v145, 0
    %v147 = vsel %vm146, %v145, 0
    %v148 = vshrl.u32 %v147, 5
    %v149 = vand.u32 %v147, 31
    %v150 = vsub.s32 32, %v149
    %v151 = vshrl.u32 683565275, %v150
    %v152 = vshll.u32 683565275, %v149
    %v153 = vshrl.u32 2475754826, %v150
    %v154 = vor.u32 %v152, %v153
    %v155 = vshll.u32 2475754826, %v149
    %v156 = vshrl.u32 2131351028, %v150
    %v157 = vor.u32 %v155, %v156
    %v158 = vshll.u32 2131351028, %v149
    %v159 = vshrl.u32 2102212464, %v150
    %v160 = vor.u32 %v158, %v159
    %v161 = vshll.u32 2102212464, %v149
    %v162 = vshrl.u32 920167782, %v150
    %v163 = vor.u32 %v161, %v162
    %v164 = vshll.u32 920167782, %v149
    %v165 = vshrl.u32 1326507024, %v150
    %v166 = vor.u32 %v164, %v165
    %vm167 = vcmp.lt.s32.totalorder %v148, 1
    %vm168 = vcmp.lt.s32.totalorder %v148, 2
    %vm169 = vcmp.lt.s32.totalorder %v148, 3
    %vm170 = vcmp.lt.s32.totalorder %v148, 4
    %v171 = vsel %vm167, %v151, %v154
    %v172 = vsel %vm170, %v160, 2102212464
    %v173 = vsel %vm169, %v157, %v172
    %v174 = vsel %vm168, %v171, %v173
    %v175 = vsel %vm167, %v154, %v157
    %v176 = vsel %vm170, %v163, 920167782
    %v177 = vsel %vm169, %v160, %v176
    %v178 = vsel %vm168, %v175, %v177
    %v179 = vsel %vm167, %v157, %v160
    %v180 = vsel %vm170, %v166, 1326507024
    %v181 = vsel %vm169, %v163, %v180
    %v182 = vsel %vm168, %v179, %v181
    %v183 = vshll.u32 %v143, 8
    %v184 = vmul.u32.u64.compose %v183, %v182
    %v185 = vextract.low.u32 %v184
    %v186 = vextract.high.u32 %v184
    %v187 = vmul.u32.u64.compose %v183, %v178
    %v188 = vextract.low.u32 %v187
    %v189 = vextract.high.u32 %v187
    %v190 = vmul.u32 %v183, %v174
    %v191 = vadd.s32 %v186, %v188
    %vm192 = vc.u32 %v186, %v188
    %v193 = vadd.s32 %v189, 1
    %v194 = vsel %vm192, %v193, %v189
    %v195 = vadd.s32 %v190, %v194
    %v196 = vadd.s32 %v195, 536870912
    %v197 = vshrl.u32 %v196, 30
    %v198 = vshll.u32 %v197, 30
    %v199 = vsub.s32 %v195, %v198
    %vm200 = vcmp.lt.s32.totalorder %v199, 0
    %v201 = vsub.s32 0, %v199
    %v202 = vsel %vm200, %v201, %v199
    %v203 = vclz %v202
    %v204 = vsub.s32 %v203, 2
    %vm205 = vcmp.gt.s32.totalorder 0, %v204
    %v206 = vsel %vm205, 0, %v204
    %v207 = vsub.s32 32, %v206
    %v208 = vshll.u32 %v199, %v206
    %v209 = vshrl.u32 %v191, %v207
    %v210 = vor.u32 %v208, %v209
    %v211 = vsub.s32 4294967266, %v206
    %v212 = vadd.s32 %v211, 127
    %v213 = vshll.u32 %v212, 23
    %v214 = vor.u32 4788187, %v213
    %v215 = vand.u32 2147483647, %v214
    %v217 = vcvt.s32.f32 %v210
    %v218 = vmul.f32 %v217, %v215
    %v219 = vxor.u32 %v218, 2147483648
    %v220 = vsel %vm137, %v219, %v218
    %v221 = vsub.s32 4, %v197
    %v222 = vsel %vm137, %v221, %v197
    %v223 = vsel %vm136, %v28, %v220
    %v224 = vsel %vm136, 0, %v222
    %v225 = vcosq.f32.pop %v223
    %v226 = vsinq.f32.pop %v223
    %vm227 = vweird.f32 %v28
    %v228 = vand.u32 %v224, 3
    %vm229 = vcmp.lt.s32.totalorder %v228, 2
    %vm230 = vcmp.eq.s32.totalorder %v228, 0
    %v231 = vxor.u32 %v226, 2147483648
    %v232 = vsel %vm230, %v225, %v231
    %vm233 = vcmp.eq.s32.totalorder %v228, 2
    %v234 = vxor.u32 %v225, 2147483648
    %v235 = vsel %vm233, %v234, %v226
    %v236 = vsel %vm229, %v232, %v235
    %v237 = vsel %vm227, nan, %v236
    %v238 = vsel %vm30, 1, 0
    %v239 = vlaneseq
    %v240 = vshrl.u32 %v239, 7
    %v241 = vsub.s32 0, %v240
    %v242 = vrot.slane %v238, %v241
    %vm243 = vcmp.eq.s32.totalorder %v242, 1
    %v244 = vsel %vm243, %v134, %v237
    %245 = vst [vmem:[#allocation2] sm:$0xff] %v244
    // Predicated region
    $region14: #{tpu_custom_call.1} parent=1 // pred_check
      _
    $region15: #{tpu_custom_call.1} parent=1 // pred_check_branch
      %247 = sbr.rel (0) target = $region17
    $region16: #{tpu_custom_call.1} parent=1 // pred_region
      %s249 = ssub.s32 128, 128
      %250 = vsyncadd [#allocation3], %s249
      %s252 = sshll.u32 [#allocation2], 4
      %s253 = int_to_ptr.vmem [resolvable:$true] %s252
      %255 = dma.vmem_to_hbm [thread:$0]  %s253, 128, %s3, [#allocation3]
    $region17: #{tpu_custom_call.1} parent=1 // pred_fallthru
      _
    // Predicated region
    $region18: #{tpu_custom_call.1} parent=1 // pred_check
      _
    $region19: #{tpu_custom_call.1} parent=1 // pred_check_branch
      %257 = sbr.rel (0) target = $region21
    $region20: #{tpu_custom_call.1} parent=1 // pred_region
      %258 = dma.done [#allocation3], 128
    $region21: #{tpu_custom_call.1} parent=1 // pred_fallthru
      _
    %259 = vsyncpa [#allocation3], 1

</llo_original>
